<compile_context>
chip_gen: v7x
topology: tpu7x:2x2x1
jax: 0.10.0
libtpu: 0.0.40
codegen_flags: <defaults>
</compile_context>

<pallas_src>
import jax
import jax.numpy as jnp
from jax import lax
from jax.experimental import pallas as pl
from jax.experimental.pallas import tpu as pltpu


def _luong_attention_kernel(dec_ref, enc_ref, w_ref, b_ref, out_ref):
    # dec_ref : (1, T_dec, D)        VMEM resident (constant along tile axis)
    # enc_ref : (1, ENC_TILE, E)     streamed tile of encoder_outputs
    # w_ref   : (D, E)               VMEM resident
    # b_ref   : (1, D)               VMEM resident
    # out_ref : (1, T_dec, ENC_TILE) transposed, lane-dense output block
    dec = dec_ref[0]                                     # (T_dec, D)
    enc = enc_ref[0]                                     # (ENC_TILE, E)

    # Tiny fused operands (recomputed per tile; negligible vs. the enc stream)
    #   M[s, e]    = sum_d dec[s, d] * W[d, e]           (T_dec, E)
    #   bias[s, 0] = sum_d dec[s, d] * b[d]              (T_dec, 1)
    m = jnp.dot(dec, w_ref[...], preferred_element_type=jnp.float32)
    bias_col = jnp.sum(dec * b_ref[...], axis=1, keepdims=True)

    # alignsT[s, t] = sum_e M[s, e] * enc[t, e] + bias[s]  -> (T_dec, ENC_TILE)
    # Transpose-free contraction; enc positions live on the (dense) lane axis.
    aligns_t = lax.dot_general(m, enc, (((1,), (1,)), ((), ())),
                               preferred_element_type=jnp.float32) + bias_col

    # Softmax over T_dec == axis 0 (sublane axis); lanes stay fully dense.
    mx = jnp.max(aligns_t, axis=0, keepdims=True)        # (1, ENC_TILE)
    e = jnp.exp(aligns_t - mx)
    denom = jnp.sum(e, axis=0, keepdims=True)            # (1, ENC_TILE)
    out_ref[0] = (e / denom).astype(out_ref.dtype)       # exact normalization


def _vmem_budget_bytes():
    """3/4 of physical VMEM (64 MiB fallback -> safe even on v7x)."""
    try:
        phys = int(pltpu.get_tpu_info().vmem_capacity_bytes)
    except Exception:
        phys = 64 * 1024 * 1024
    return max(32 * 1024 * 1024, phys * 3 // 4)


def _pick_enc_tile(t_enc, e_dim, t_dec, budget_bytes):
    """Bytes-targeted tile: ~2 MiB of enc rows, a multiple of 128 (lane-dense
    output blocks), shrunk until the double-buffered working set fits in half
    of the VMEM budget. Short sequences use a single full-extent tile."""
    f32 = 4
    rows = max(128, ((2 * 1024 * 1024) // (e_dim * f32)) // 128 * 128)

    def step_bytes(r):
        return f32 * (2 * r * e_dim          # enc tile, double buffered
                      + 2 * r * t_dec        # out tile, double buffered
                      + 3 * r * t_dec)       # aligns / exp f32 temporaries

    while rows > 128 and step_bytes(rows) > budget_bytes // 2:
        rows -= 128
    return t_enc if t_enc <= rows else rows


def luong_attention(decoder_hidden, encoder_outputs, w, b, *,
                    enc_tile=None, transposed_output=False):
    """decoder_hidden (B,T_dec,D), encoder_outputs (B,T_enc,E), w (D,E), b (D,).

    Returns softmax(Linear(encoder_outputs) @ decoder_hidden^T, axis=-1) with
    shape (B, T_enc, T_dec); with transposed_output=True returns the kernel's
    native lane-dense layout (B, T_dec, T_enc) and skips one transpose pass.
    """
    B, T_dec, D = decoder_hidden.shape
    _, T_enc, E = encoder_outputs.shape
    assert w.shape == (D, E) and b.shape == (D,)
    b2d = b.reshape(1, D).astype(jnp.float32)

    budget = _vmem_budget_bytes()
    if enc_tile is None:
        enc_tile = _pick_enc_tile(T_enc, E, T_dec, budget)
    enc_tile = min(enc_tile, T_enc)
    assert enc_tile == T_enc or enc_tile % 128 == 0, (
        "enc_tile must equal T_enc or be a multiple of 128 (lane-dense store)")
    n_tiles = pl.cdiv(T_enc, enc_tile)

    f32 = 4
    step_bytes = f32 * enc_tile * (2 * E + 5 * T_dec)
    resident_bytes = f32 * (2 * T_dec * D + D * E + D)
    vmem_limit = int(min(budget,
                         max(32 * 1024 * 1024,
                             2 * step_bytes + resident_bytes + (1 << 20))))

    out_t = pl.pallas_call(
        _luong_attention_kernel,
        out_shape=jax.ShapeDtypeStruct((B, T_dec, T_enc), jnp.float32),
        grid_spec=pltpu.PrefetchScalarGridSpec(
            num_scalar_prefetch=0,
            grid=(B, n_tiles),
            in_specs=[
                # decoder_hidden: constant along the enc-tile axis (no re-DMA).
                pl.BlockSpec((1, T_dec, D), lambda bi, ti: (bi, 0, 0)),
                # encoder_outputs: streamed along T_enc.
                pl.BlockSpec((1, enc_tile, E), lambda bi, ti: (bi, ti, 0)),
                # W, b: shared across the whole grid, stay VMEM resident.
                pl.BlockSpec((D, E), lambda bi, ti: (0, 0)),
                pl.BlockSpec((1, D), lambda bi, ti: (0, 0)),
            ],
            out_specs=pl.BlockSpec((1, T_dec, enc_tile),
                                   lambda bi, ti: (bi, 0, ti)),
        ),
        compiler_params=pltpu.CompilerParams(
            # No cross-iteration state -> both axes shard across TensorCores.
            dimension_semantics=("parallel", "parallel"),
            vmem_limit_bytes=vmem_limit,
        ),
    )(decoder_hidden, encoder_outputs, w, b2d)

    if transposed_output:
        return out_t                        # (B, T_dec, T_enc)
    return jnp.swapaxes(out_t, 1, 2)        # (B, T_enc, T_dec)  module layout


def luong_attention_ref(decoder_hidden, encoder_outputs, w, b):
    proj = jnp.einsum("bte,de->btd", encoder_outputs, w,
                      precision=lax.Precision.HIGHEST) + b
    aligns = jnp.einsum("btd,bsd->bts", proj, decoder_hidden,
                        precision=lax.Precision.HIGHEST)
    return jax.nn.softmax(aligns, axis=-1)


if __name__ == "__main__":
    B = 2
    T_dec = 8            # decoder sequence length
    encoder_dims = 32
    decoder_dims = 32

    key = jax.random.PRNGKey(0)
    k1, k2, k3, k4, k5, k6 = jax.random.split(key, 6)

    # nn.Linear(encoder_dims, decoder_dims): weight (D, E), bias (D,)
    bound = 1.0 / (encoder_dims ** 0.5)
    w = jax.random.uniform(k3, (decoder_dims, encoder_dims),
                           minval=-bound, maxval=bound, dtype=jnp.float32)
    bias = jax.random.uniform(k4, (decoder_dims,),
                              minval=-bound, maxval=bound, dtype=jnp.float32)

    # Case 1: short T_enc -> single full-extent tile per batch.
    T_enc1 = 16
    dec1 = jax.random.normal(k1, (B, T_dec, decoder_dims), dtype=jnp.float32)
    enc1 = jax.random.normal(k2, (B, T_enc1, encoder_dims), dtype=jnp.float32)
    out1 = jax.block_until_ready(luong_attention(dec1, enc1, w, bias))
    ref1 = luong_attention_ref(dec1, enc1, w, bias)
    assert out1.shape == (B, T_enc1, T_dec)
    # 5e-3 tolerance covers MXU multi-pass f32 rounding on hardware; genuine
    # layout / semantics bugs would show up as O(0.1) differences.
    assert jnp.allclose(out1, ref1, atol=5e-3, rtol=5e-3)
    # Attention rows must sum to 1 (exact softmax normalization, no approx).
    assert jnp.allclose(jnp.sum(out1, axis=-1), 1.0, atol=1e-4)

    # Case 2: longer T_enc streamed through lane-dense 128-row tiles
    # (exercises the multi-tile pipeline and the transposed store path).
    T_enc2 = 384
    dec2 = jax.random.normal(k5, (B, T_dec, decoder_dims), dtype=jnp.float32)
    enc2 = jax.random.normal(k6, (B, T_enc2, encoder_dims), dtype=jnp.float32)
    out2 = jax.block_until_ready(
        luong_attention(dec2, enc2, w, bias, enc_tile=128))
    ref2 = luong_attention_ref(dec2, enc2, w, bias)
    assert out2.shape == (B, T_enc2, T_dec)
    assert jnp.allclose(out2, ref2, atol=5e-3, rtol=5e-3)

    print("KERNEL_OK")
</pallas_src>

<mosaic_0001>
module attributes {stable_mosaic.version = 11 : i64} {
  func.func @_luong_attention_kernel(%arg0: i32, %arg1: i32, %arg2: memref<1x8x32xf32, #tpu.memory_space<vmem>>, %arg3: memref<1x16x32xf32, #tpu.memory_space<vmem>>, %arg4: memref<32x32xf32, #tpu.memory_space<vmem>>, %arg5: memref<1x32xf32, #tpu.memory_space<vmem>>, %arg6: memref<1x8x16xf32, #tpu.memory_space<vmem>>) attributes {dimension_semantics = [#tpu.dimension_semantics<parallel>, #tpu.dimension_semantics<parallel>], iteration_bounds = array<i64: 2, 1>, scalar_prefetch = 0 : i64, scratch_operands = 0 : i64, tpu.core_type = #tpu.core_type<tc>, window_params = [{transform_indices = @transform_0, window_bounds = array<i64: 1, 8, 32>}, {transform_indices = @transform_1, window_bounds = array<i64: 1, 16, 32>}, {pipeline_mode = #tpu.pipeline_mode<synchronous>, transform_indices = @transform_2, window_bounds = array<i64: 32, 32>}, {pipeline_mode = #tpu.pipeline_mode<synchronous>, transform_indices = @transform_3, window_bounds = array<i64: 1, 32>}, {transform_indices = @transform_4, window_bounds = array<i64: 1, 8, 16>}]} {
    %c0 = arith.constant 0 : index
    %c0_0 = arith.constant 0 : index
    %c0_1 = arith.constant 0 : index
    %0 = vector.load %arg2[%c0, %c0_0, %c0_1] : memref<1x8x32xf32, #tpu.memory_space<vmem>>, vector<1x8x32xf32>
    %1 = vector.shape_cast %0 : vector<1x8x32xf32> to vector<8x32xf32>
    %c0_2 = arith.constant 0 : index
    %c0_3 = arith.constant 0 : index
    %c0_4 = arith.constant 0 : index
    %2 = vector.load %arg3[%c0_2, %c0_3, %c0_4] : memref<1x16x32xf32, #tpu.memory_space<vmem>>, vector<1x16x32xf32>
    %3 = vector.shape_cast %2 : vector<1x16x32xf32> to vector<16x32xf32>
    %c0_5 = arith.constant 0 : index
    %c0_6 = arith.constant 0 : index
    %4 = vector.load %arg4[%c0_5, %c0_6] : memref<32x32xf32, #tpu.memory_space<vmem>>, vector<32x32xf32>
    %cst = arith.constant dense<0.000000e+00> : vector<8x32xf32>
    %5 = tpu.matmul %1, %4, %cst {dimension_numbers = #tpu.dot_dimension_numbers<[1], [0], [0], [1], [0, 0, 1, 1], [], []>} : vector<8x32xf32>, vector<32x32xf32>, vector<8x32xf32> -> vector<8x32xf32>
    %c0_7 = arith.constant 0 : index
    %c0_8 = arith.constant 0 : index
    %6 = vector.load %arg5[%c0_7, %c0_8] : memref<1x32xf32, #tpu.memory_space<vmem>>, vector<1x32xf32>
    %7 = vector.broadcast %6 : vector<1x32xf32> to vector<8x32xf32>
    %8 = arith.mulf %1, %7 : vector<8x32xf32>
    %cst_9 = arith.constant dense<0.000000e+00> : vector<8xf32>
    %9 = vector.multi_reduction <add>, %8, %cst_9 [1] : vector<8x32xf32> to vector<8xf32>
    %10 = vector.shape_cast %9 : vector<8xf32> to vector<8x1xf32>
    %cst_10 = arith.constant dense<0.000000e+00> : vector<8x16xf32>
    %11 = tpu.matmul %5, %3, %cst_10 {dimension_numbers = #tpu.dot_dimension_numbers<[1], [1], [0], [0], [0, 0, 1, 0], [], []>} : vector<8x32xf32>, vector<16x32xf32>, vector<8x16xf32> -> vector<8x16xf32>
    %12 = vector.broadcast %10 : vector<8x1xf32> to vector<8x16xf32>
    %13 = arith.addf %11, %12 : vector<8x16xf32>
    %cst_11 = arith.constant dense<0xFF800000> : vector<16xf32>
    %14 = vector.multi_reduction <maximumf>, %13, %cst_11 [0] : vector<8x16xf32> to vector<16xf32>
    %15 = vector.shape_cast %14 : vector<16xf32> to vector<1x16xf32>
    %16 = vector.broadcast %15 : vector<1x16xf32> to vector<8x16xf32>
    %17 = arith.subf %13, %16 : vector<8x16xf32>
    %18 = math.exp %17 : vector<8x16xf32>
    %cst_12 = arith.constant dense<0.000000e+00> : vector<16xf32>
    %19 = vector.multi_reduction <add>, %18, %cst_12 [0] : vector<8x16xf32> to vector<16xf32>
    %20 = vector.shape_cast %19 : vector<16xf32> to vector<1x16xf32>
    %21 = vector.broadcast %20 : vector<1x16xf32> to vector<8x16xf32>
    %22 = arith.divf %18, %21 : vector<8x16xf32>
    %c0_13 = arith.constant 0 : index
    %c0_14 = arith.constant 0 : index
    %c0_15 = arith.constant 0 : index
    %23 = vector.load %arg6[%c0_13, %c0_14, %c0_15] : memref<1x8x16xf32, #tpu.memory_space<vmem>>, vector<1x8x16xf32>
    %24 = vector.shape_cast %23 : vector<1x8x16xf32> to vector<8x16xf32>
    %25 = vector.shape_cast %22 : vector<8x16xf32> to vector<1x8x16xf32>
    tpu.vector_store %arg6[%c0_13, %c0_14, %c0_15], %25 {strides = array<i32>} : memref<1x8x16xf32, #tpu.memory_space<vmem>>, vector<1x8x16xf32>,
    return
  }
  func.func @transform_0(%arg0: i32, %arg1: i32) -> (i32, i32, i32) {
    %c0_i32 = arith.constant 0 : i32
    %c0_i32_0 = arith.constant 0 : i32
    %c0_i32_1 = arith.constant 0 : i32
    return %arg0, %c0_i32, %c0_i32_0 : i32, i32, i32
  }
  func.func @transform_1(%arg0: i32, %arg1: i32) -> (i32, i32, i32) {
    %c0_i32 = arith.constant 0 : i32
    %c0_i32_0 = arith.constant 0 : i32
    return %arg0, %arg1, %c0_i32 : i32, i32, i32
  }
  func.func @transform_2(%arg0: i32, %arg1: i32) -> (i32, i32) {
    %c0_i32 = arith.constant 0 : i32
    %c0_i32_0 = arith.constant 0 : i32
    %c0_i32_1 = arith.constant 0 : i32
    return %c0_i32, %c0_i32_0 : i32, i32
  }
  func.func @transform_3(%arg0: i32, %arg1: i32) -> (i32, i32) {
    %c0_i32 = arith.constant 0 : i32
    %c0_i32_0 = arith.constant 0 : i32
    %c0_i32_1 = arith.constant 0 : i32
    return %c0_i32, %c0_i32_0 : i32, i32
  }
  func.func @transform_4(%arg0: i32, %arg1: i32) -> (i32, i32, i32) {
    %c0_i32 = arith.constant 0 : i32
    %c0_i32_0 = arith.constant 0 : i32
    return %arg0, %c0_i32, %arg1 : i32, i32, i32
  }
}

</mosaic_0001>

<llo_original>
// kernel: tpu_custom_call.1
$region0: #{tpu_custom_call.1}
  #allocation0 [shape = 'u32[]', space=smem, size = 0x4, offset = 0x4, fixed_abs, tag = 'smem constant byte address 0x4 - core index']
  #allocation1 [shape = 'u32[144,128]{1,0:T(1,128)}', space=vmem, size = 0x12000, scoped, tag = 'internal scratch']
  %s0 = inlined_call_operand.hbm [shape: f32[2,8,32], index: 0, kind: input, shape index: {}]
  %s1 = inlined_call_operand.hbm [shape: f32[2,16,32], index: 1, kind: input, shape index: {}]
  %s2 = inlined_call_operand.hbm [shape: f32[32,32], index: 2, kind: input, shape index: {}]
  %s3 = inlined_call_operand.vmem [shape: f32[1,32], index: 3, kind: input, shape index: {}]
  %s4 = inlined_call_operand.hbm [shape: f32[2,8,16], index: 4, kind: output, shape index: {}]
  %s5 = sld [smem:[#allocation0]]
  $region61: #{tpu_custom_call.1} parent=0
    _
  %s7 = ssub.s32 1, %s5
  %s8 = scalar_select 0, %s7, %s5
  $region1: #{tpu_custom_call.1} parent=0
    #allocation2 [shape = 'u8[8192]{0}', space=vmem, size = 0x2000, scoped, tag = 'input window, operand 0']
    #allocation3 [shape = 's32[2]{0}', space=sflag, size = 0x8, scoped, tag = 'scoped memory for tpu_custom_call.1']
    #allocation4 [shape = 's32[2]{0}', space=sflag, size = 0x8, scoped, tag = 'scoped memory for tpu_custom_call.1']
    #allocation5 [shape = 'u8[16384]{0}', space=vmem, size = 0x4000, scoped, tag = 'input window, operand 1']
    #allocation6 [shape = 's32[2]{0}', space=sflag, size = 0x8, scoped, tag = 'scoped memory for tpu_custom_call.1']
    #allocation7 [shape = 'u8[16384]{0}', space=vmem, size = 0x4000, scoped, tag = 'input window, operand 2, single buffered']
    #allocation8 [shape = 'u8[8192]{0}', space=vmem, size = 0x2000, scoped, tag = 'output window, operand 0']
    %9 = vsyncpa [#allocation3], 0
    %s10 = scalar_lea.sflag [#allocation3], 1
    %11 = vsyncpa %s10, 0
    %12 = vsyncpa [#allocation6], 0
    %s13 = scalar_lea.sflag [#allocation6], 1
    %14 = vsyncpa %s13, 0
    %15 = vsyncpa [#allocation4], 0
    %s16 = scalar_lea.sflag [#allocation4], 1
    %17 = vsyncpa %s16, 0
    loop: start=0, step=1, limit=4
    $region2: #{tpu_custom_call.1} parent=1 // loop_pre_header
      _
    $region3: #{tpu_custom_call.1} parent=1 // loop_header
      %s19 = sphi 0, %s23
      %p20 = scmp.ge.s32.totalorder %s19, 4
      %s26 = sphi 0, %s38
      %s27 = sphi 0, %s34
      %s28 = sphi 0, %s26
      %s29 = sphi 0, %s27
      %s30 = sphi 0, %s28
      %s31 = sphi 0, %s29
      %s41 = sphi 0, %s43
      %s44 = sphi 0, %s41
      %s45 = sphi 0, %s44
      %s61 = sphi 0, %s45
      %s69 = sphi 0, %s71
      %s72 = sphi 0, %s69
      %s73 = sphi 0, %s72
      %s89 = sphi 0, %s73
      %s93 = sphi 0, %s93
      %s95 = sphi 0, %s93
      %s96 = sphi 0, %s95
      %s110 = sphi 0, %s96
      %s114 = sphi 0, %s114
      %s116 = sphi 0, %s114
      %s117 = sphi 0, %s116
      %s131 = sphi 0, %s117
      %s139 = sphi 0, %s141
      %s142 = sphi 0, %s139
      %s143 = sphi 0, %s142
      %s159 = sphi 0, %s143
    $region4: #{tpu_custom_call.1} parent=1 // loop_header_branch
      %22 = sbr.rel (%p20) target = $region8
    $region5: #{tpu_custom_call.1} parent=1 // loop_body
      %s24 = ssub.s32 %s19, 1
      %s25 = ssub.s32 %s19, 2
      %s32 = sadd.s32 1, %s27
      %p33 = scmp.ge.s32.totalorder %s32, 1
      %s34 = scalar_select %p33, 0, %s32
      %s35 = sadd.s32 1, %s26
      %s36 = scalar_select %p33, %s35, %s26
      %p37 = scmp.ge.s32.totalorder %s36, 2
      %s38 = scalar_select %p37, 0, %s36
      %s39 = ssub.s32 %s26, %s38
      %p40 = scmp.eq.s32.totalorder %s39, 0
      %s42 = sadd.s32 %s41, 1
      %s43 = scalar_select %p40, %s41, %s42
      %p46 = pneg %p40
      %p47 = scmp.eq.s32.totalorder %s19, 1
      %p48 = por %p46, %p47
      %p49 = scmp.ne.s32.totalorder %s41, %s44
      %p50 = scmp.eq.s32.totalorder %s19, 0
      %p51 = por %p49, %p50
      %p52 = scmp.ne.s32.totalorder %s41, %s44
      %p53 = scmp.eq.s32.totalorder %s24, 1
      %p54 = por %p52, %p53
      %p55 = scmp.ne.s32.totalorder %s44, %s45
      %p56 = scmp.eq.s32.totalorder %s24, 0
      %p57 = por %p55, %p56
      %p58 = scmp.ne.s32.totalorder %s44, %s45
      %p59 = scmp.eq.s32.totalorder %s25, 1
      %p60 = por %p58, %p59
      %p62 = scmp.ne.s32.totalorder %s45, %s61
      %p63 = scmp.eq.s32.totalorder %s25, 0
      %p64 = por %p62, %p63
      %s65 = ssub.s32 %s26, %s38
      %s66 = ssub.s32 %s27, %s34
      %s67 = sor.u32 %s65, %s66
      %p68 = scmp.eq.s32.totalorder %s67, 0
      %s70 = sadd.s32 %s69, 1
      %s71 = scalar_select %p68, %s69, %s70
      %p74 = pneg %p68
      %p75 = scmp.eq.s32.totalorder %s19, 1
      %p76 = por %p74, %p75
      %p77 = scmp.ne.s32.totalorder %s69, %s72
      %p78 = scmp.eq.s32.totalorder %s19, 0
      %p79 = por %p77, %p78
      %p80 = scmp.ne.s32.totalorder %s69, %s72
      %p81 = scmp.eq.s32.totalorder %s24, 1
      %p82 = por %p80, %p81
      %p83 = scmp.ne.s32.totalorder %s72, %s73
      %p84 = scmp.eq.s32.totalorder %s24, 0
      %p85 = por %p83, %p84
      %p86 = scmp.ne.s32.totalorder %s72, %s73
      %p87 = scmp.eq.s32.totalorder %s25, 1
      %p88 = por %p86, %p87
      %p90 = scmp.ne.s32.totalorder %s73, %s89
      %p91 = scmp.eq.s32.totalorder %s25, 0
      %p92 = por %p90, %p91
      %s94 = sadd.s32 %s93, 1
      %p97 = scmp.eq.s32.totalorder %s19, 1
      %p98 = scmp.ne.s32.totalorder %s93, %s95
      %p99 = scmp.eq.s32.totalorder %s19, 0
      %p100 = por %p98, %p99
      %p101 = scmp.ne.s32.totalorder %s93, %s95
      %p102 = scmp.eq.s32.totalorder %s24, 1
      %p103 = por %p101, %p102
      %p104 = scmp.ne.s32.totalorder %s95, %s96
      %p105 = scmp.eq.s32.totalorder %s24, 0
      %p106 = por %p104, %p105
      %p107 = scmp.ne.s32.totalorder %s95, %s96
      %p108 = scmp.eq.s32.totalorder %s25, 1
      %p109 = por %p107, %p108
      %p111 = scmp.ne.s32.totalorder %s96, %s110
      %p112 = scmp.eq.s32.totalorder %s25, 0
      %p113 = por %p111, %p112
      %s115 = sadd.s32 %s114, 1
      %p118 = scmp.eq.s32.totalorder %s19, 1
      %p119 = scmp.ne.s32.totalorder %s114, %s116
      %p120 = scmp.eq.s32.totalorder %s19, 0
      %p121 = por %p119, %p120
      %p122 = scmp.ne.s32.totalorder %s114, %s116
      %p123 = scmp.eq.s32.totalorder %s24, 1
      %p124 = por %p122, %p123
      %p125 = scmp.ne.s32.totalorder %s116, %s117
      %p126 = scmp.eq.s32.totalorder %s24, 0
      %p127 = por %p125, %p126
      %p128 = scmp.ne.s32.totalorder %s116, %s117
      %p129 = scmp.eq.s32.totalorder %s25, 1
      %p130 = por %p128, %p129
      %p132 = scmp.ne.s32.totalorder %s117, %s131
      %p133 = scmp.eq.s32.totalorder %s25, 0
      %p134 = por %p132, %p133
      %s135 = ssub.s32 %s26, %s38
      %s136 = ssub.s32 %s27, %s34
      %s137 = sor.u32 %s135, %s136
      %p138 = scmp.eq.s32.totalorder %s137, 0
      %s140 = sadd.s32 %s139, 1
      %s141 = scalar_select %p138, %s139, %s140
      %p144 = pneg %p138
      %p145 = scmp.eq.s32.totalorder %s19, 1
      %p146 = por %p144, %p145
      %p147 = scmp.ne.s32.totalorder %s139, %s142
      %p148 = scmp.eq.s32.totalorder %s19, 0
      %p149 = por %p147, %p148
      %p150 = scmp.ne.s32.totalorder %s139, %s142
      %p151 = scmp.eq.s32.totalorder %s24, 1
      %p152 = por %p150, %p151
      %p153 = scmp.ne.s32.totalorder %s142, %s143
      %p154 = scmp.eq.s32.totalorder %s24, 0
      %p155 = por %p153, %p154
      %p156 = scmp.ne.s32.totalorder %s142, %s143
      %p157 = scmp.eq.s32.totalorder %s25, 1
      %p158 = por %p156, %p157
      %p160 = scmp.ne.s32.totalorder %s143, %s159
      %p161 = scmp.eq.s32.totalorder %s25, 0
      %p162 = por %p160, %p161
      %p163 = scmp.le.s32.totalorder 1, %s19
      %p164 = scmp.lt.s32.totalorder %s19, 3
      %p165 = pnand %p163, %p164
      %p166 = pneg %p165
      // Predicated region
      $region9: #{tpu_custom_call.1} parent=5 // pred_check
        _
      $region10: #{tpu_custom_call.1} parent=5 // pred_check_branch
        %168 = sbr.rel (%p165) target = $region12
      $region11: #{tpu_custom_call.1} parent=5 // pred_region
        %s169 = ssub.s32 %s19, 1
        // Predicated region
        $region13: #{tpu_custom_call.1} parent=11 // pred_check
          %p170 = pneg %p106
        $region14: #{tpu_custom_call.1} parent=11 // pred_check_branch
          %172 = sbr.rel (%p170) target = $region16
        $region15: #{tpu_custom_call.1} parent=11 // pred_region
          %s174 = ssub.s32 512, 512
          %175 = vsyncadd [#allocation6], %s174
          %s176 = sshll.u32 [#allocation7], 4
          %s177 = int_to_ptr.vmem [resolvable:$true] %s176
          %182 = dma.hbm_to_vmem [thread:$0]  %s2, 512, %s177, [#allocation6], 128, 128, 8
        $region16: #{tpu_custom_call.1} parent=11 // pred_fallthru
          _
        // Predicated region
        $region17: #{tpu_custom_call.1} parent=11 // pred_check
          %p183 = pneg %p127
        $region18: #{tpu_custom_call.1} parent=11 // pred_check_branch
          %185 = sbr.rel (%p183) target = $region20
        $region19: #{tpu_custom_call.1} parent=11 // pred_region
          _
        $region20: #{tpu_custom_call.1} parent=11 // pred_fallthru
          _
      $region12: #{tpu_custom_call.1} parent=5 // pred_fallthru
        _
      %p186 = scmp.lt.s32.totalorder %s19, 2
      // Predicated region
      $region21: #{tpu_custom_call.1} parent=5 // pred_check
        %p187 = pneg %p186
      $region22: #{tpu_custom_call.1} parent=5 // pred_check_branch
        %189 = sbr.rel (%p187) target = $region24
      $region23: #{tpu_custom_call.1} parent=5 // pred_region
        // Predicated region
        $region25: #{tpu_custom_call.1} parent=23 // pred_check
          %p190 = pneg %p51
        $region26: #{tpu_custom_call.1} parent=23 // pred_check_branch
          %192 = sbr.rel (%p190) target = $region28
        $region27: #{tpu_custom_call.1} parent=23 // pred_region
          %s193 = sand.u32 %s41, 1
          %s194 = scalar_lea.sflag [#allocation3], %s193
          %s195 = sand.u32 %s41, 1
          %s196 = smul.addr %s195, 8
          %s197 = scalar_lea.vmem [#allocation2], %s196
          %s199 = ssub.s32 128, 128
          %200 = vsyncadd %s194, %s199
          %s201 = smul.addr %s26, 128
          %s202 = scalar_lea.hbm %s0, %s201
          %s204 = sshll.u32 %s197, 4
          %s205 = int_to_ptr.vmem [resolvable:$true] %s204
          %207 = dma.hbm_to_vmem [thread:$0]  %s202, 128, %s205, %s194
        $region28: #{tpu_custom_call.1} parent=23 // pred_fallthru
          _
        // Predicated region
        $region29: #{tpu_custom_call.1} parent=23 // pred_check
          %p208 = pneg %p79
        $region30: #{tpu_custom_call.1} parent=23 // pred_check_branch
          %210 = sbr.rel (%p208) target = $region32
        $region31: #{tpu_custom_call.1} parent=23 // pred_region
          %s211 = sand.u32 %s19, 1
          %s212 = scalar_lea.sflag [#allocation6], %s211
          %s213 = sand.u32 %s69, 1
          %s214 = smul.addr %s213, 16
          %s215 = scalar_lea.vmem [#allocation5], %s214
          %s216 = smul.u32 2, %s27
          %s218 = ssub.s32 256, 256
          %219 = vsyncadd %s212, %s218
          %s220 = smul.addr %s26, 2
          %s221 = sadd.s32 %s216, %s220
          %s222 = smul.addr %s221, 128
          %s223 = scalar_lea.hbm %s1, %s222
          %s224 = sshll.u32 %s215, 4
          %s225 = int_to_ptr.vmem [resolvable:$true] %s224
          %230 = dma.hbm_to_vmem [thread:$0]  %s223, 256, %s225, %s212, 128, 128, 8
        $region32: #{tpu_custom_call.1} parent=23 // pred_fallthru
          _
      $region24: #{tpu_custom_call.1} parent=5 // pred_fallthru
        _
      %p231 = scmp.le.s32.totalorder 1, %s19
      %p232 = scmp.lt.s32.totalorder %s19, 3
      %p233 = pnand %p231, %p232
      %p234 = pneg %p233
      // Predicated region
      $region33: #{tpu_custom_call.1} parent=5 // pred_check
        _
      $region34: #{tpu_custom_call.1} parent=5 // pred_check_branch
        %236 = sbr.rel (%p233) target = $region36
      $region35: #{tpu_custom_call.1} parent=5 // pred_region
        %s237 = ssub.s32 %s19, 1
        %s238 = sand.u32 %s44, 1
        %s239 = scalar_lea.sflag [#allocation3], %s238
        %s240 = sand.u32 %s44, 1
        %s241 = smul.addr %s240, 8
        %s242 = scalar_lea.vmem [#allocation2], %s241
        // Predicated region
        $region37: #{tpu_custom_call.1} parent=35 // pred_check
          %p243 = pneg %p57
        $region38: #{tpu_custom_call.1} parent=35 // pred_check_branch
          %245 = sbr.rel (%p243) target = $region40
        $region39: #{tpu_custom_call.1} parent=35 // pred_region
          %246 = dma.done %s239, 128
        $region40: #{tpu_custom_call.1} parent=35 // pred_fallthru
          _
        %s247 = sand.u32 %s24, 1
        %s248 = scalar_lea.sflag [#allocation6], %s247
        %s249 = sand.u32 %s72, 1
        %s250 = smul.addr %s249, 16
        %s251 = scalar_lea.vmem [#allocation5], %s250
        // Predicated region
        $region41: #{tpu_custom_call.1} parent=35 // pred_check
          %p252 = pneg %p85
        $region42: #{tpu_custom_call.1} parent=35 // pred_check_branch
          %254 = sbr.rel (%p252) target = $region44
        $region43: #{tpu_custom_call.1} parent=35 // pred_region
          %255 = dma.done %s248, 256
        $region44: #{tpu_custom_call.1} parent=35 // pred_fallthru
          _
        // Predicated region
        $region45: #{tpu_custom_call.1} parent=35 // pred_check
          %p256 = pneg %p106
        $region46: #{tpu_custom_call.1} parent=35 // pred_check_branch
          %258 = sbr.rel (%p256) target = $region48
        $region47: #{tpu_custom_call.1} parent=35 // pred_region
          %259 = dma.done [#allocation6], 512
        $region48: #{tpu_custom_call.1} parent=35 // pred_fallthru
          _
        %s260 = sand.u32 %s44, 1
        %s261 = scalar_lea.sflag [#allocation3], %s260
        %s262 = sand.u32 %s44, 1
        %s263 = smul.addr %s262, 8
        %s264 = scalar_lea.vmem [#allocation2], %s263
        %p265 = pneg %p57
        %p266 = pneg %p54
        %s267 = sand.u32 %s24, 1
        %s268 = scalar_lea.sflag [#allocation6], %s267
        %s269 = sand.u32 %s72, 1
        %s270 = smul.addr %s269, 16
        %s271 = scalar_lea.vmem [#allocation5], %s270
        %p272 = pneg %p85
        %p273 = pneg %p82
        %p274 = pneg %p106
        %p275 = pneg %p103
        %p276 = pneg %p127
        %p277 = pneg %p124
        %p278 = pneg %p155
        %p279 = pneg %p152
        %s280 = sand.u32 %s142, 1
        %s281 = scalar_lea.sflag [#allocation4], %s280
        %s282 = sand.u32 %s142, 1
        %s283 = smul.addr %s282, 8
        %s284 = scalar_lea.vmem [#allocation8], %s283
        %s285 = smul.u32 2, %s29
        %v286 = vld [vmem:[%s242] sm:$0xff]
        %v287 = vld [vmem:[%s251] sm:$0xff]
        %v288 = vld [vmem:[%s251 + $0x8] sm:$0xff]
        %v289 = vld [vmem:[#allocation7] sm:$0xff]
        %v290 = vld [vmem:[#allocation7 + $0x8] sm:$0xff]
        %v291 = vld [vmem:[#allocation7 + $0x10] sm:$0xff]
        %v292 = vld [vmem:[#allocation7 + $0x18] sm:$0xff]
        %vm293 = vcmask 261120
        %v295 = vsel %vm293, %v286, 0
        %297 = vmatprep.subr.mxu0 0.0
        %298 = vmatpush1.msra.mxu0 %v289
        %299 = vmatprep.subr.mxu0 0.0
        %300 = vmatpush1.msra.mxu0 %v290
        %301 = vmatprep.subr.mxu0 0.0
        %302 = vmatpush1.msra.mxu0 %v291
        %303 = vmatprep.subr.mxu0 0.0
        %304 = vmatpush1.msra.mxu0 %v292
        %305 = vmatprep.subr.mxu0 0.0
        %306 = vmatpush1.msra.mxu0 0.0
        %307 = vmatprep.subr.mxu0 0.0
        %308 = vmatpush1.msra.mxu0 0.0
        %309 = vmatprep.subr.mxu0 0.0
        %310 = vmatpush1.msra.mxu0 0.0
        %311 = vmatprep.subr.mxu0 0.0
        %312 = vmatpush1.msra.mxu0 0.0
        %313 = vmatprep.subr.mxu0 0.0
        %314 = vmatpush1.msra.mxu0 0.0
        %315 = vmatprep.subr.mxu0 0.0
        %316 = vmatpush1.msra.mxu0 0.0
        %317 = vmatprep.subr.mxu0 0.0
        %318 = vmatpush1.msra.mxu0 0.0
        %319 = vmatprep.subr.mxu0 0.0
        %320 = vmatpush1.msra.mxu0 0.0
        %321 = vmatprep.subr.mxu0 0.0
        %322 = vmatpush1.msra.mxu0 0.0
        %323 = vmatprep.subr.mxu0 0.0
        %324 = vmatpush1.msra.mxu0 0.0
        %325 = vmatprep.subr.mxu0 0.0
        %326 = vmatpush1.msra.mxu0 0.0
        %327 = vmatprep.subr.mxu0 0.0
        %328 = vmatpush1.msra.mxu0 0.0
        %329 = vmatprep.subr.mxu0 0.0
        %330 = vmatpush1.msra.mxu0 0.0
        %331 = vmatprep.subr.mxu0 0.0
        %332 = vmatpush1.msra.mxu0 0.0
        %333 = vmatprep.subr.mxu0 0.0
        %334 = vmatpush1.msra.mxu0 0.0
        %335 = vmatprep.subr.mxu0 0.0
        %336 = vmatpush1.msra.mxu0 0.0
        %337 = vmatprep.subr.mxu0 0.0
        %338 = vmatpush1.msra.mxu0 0.0
        %339 = vmatprep.subr.mxu0 0.0
        %340 = vmatpush1.msra.mxu0 0.0
        %341 = vmatprep.subr.mxu0 0.0
        %342 = vmatpush1.msra.mxu0 0.0
        %343 = vmatprep.subr.mxu0 0.0
        %344 = vmatpush1.msra.mxu0 0.0
        %345 = vmatprep.subr.mxu0 0.0
        %346 = vmatpush1.msra.mxu0 0.0
        %347 = vmatprep.subr.mxu0 0.0
        %348 = vmatpush1.msra.mxu0 0.0
        %349 = vmatprep.subr.mxu0 0.0
        %350 = vmatpush1.msra.mxu0 0.0
        %351 = vmatprep.subr.mxu0 0.0
        %352 = vmatpush1.msra.mxu0 0.0
        %353 = vmatprep.subr.mxu0 0.0
        %354 = vmatpush1.msra.mxu0 0.0
        %355 = vmatprep.subr.mxu0 0.0
        %356 = vmatpush1.msra.mxu0 0.0
        %357 = vmatprep.subr.mxu0 0.0
        %358 = vmatpush1.msra.mxu0 0.0
        %359 = vmatprep.subr.mxu0 0.0
        %360 = vmatpush1.msra.mxu0 0.0
        %361 = vmatprep.mubr.f32.mxu0 0.0
        %362 = vmatmul.mubr.f32.gmra.mrb[0].mxu0 %v295
        %v363 = vpop.f32.mrb[0].mxu0
        %v364 = vadd.f32 0.0, %v363
        %v365 = vpop.f32.mrb[0].mxu0
        %366 = vdwg.mxu0
        %v367 = vld [vmem:[%s3] sm:$0x1]
        %v369 = vlaneseq
        %v370 = vshrl.u32 %v369, 7
        %v371 = vsub.s32 0, %v370
        %v372 = vrot.slane %v367, %v371
        %v374 = vmul.f32 %v286, %v372
        %v375 = vsel %vm293, %v374, 0.0
        %376 = vadd.xlane.f32.xlu0 %v375
        %v377 = vpop.xlane.xlu0 %376
        %v379 = vsel %vm293, %v364, 0
        %v382 = vsel %vm293, %v287, 0
        %v385 = vsel %vm293, %v288, 0
        %387 = vmatprep.subr.mxu0 0.0
        %388 = vmatpush1.xpose.msra.mxu0 %v382
        %389 = vmatprep.subr.mxu0 0.0
        %390 = vmatpush1.xpose.msra.mxu0 %v385
        %391 = vmatprep.subr.mxu0 0.0
        %392 = vmatpush1.xpose.msra.mxu0 0.0
        %393 = vmatprep.subr.mxu0 0.0
        %394 = vmatpush1.xpose.msra.mxu0 0.0
        %395 = vmatprep.subr.mxu0 0.0
        %396 = vmatpush1.xpose.msra.mxu0 0.0
        %397 = vmatprep.subr.mxu0 0.0
        %398 = vmatpush1.xpose.msra.mxu0 0.0
        %399 = vmatprep.subr.mxu0 0.0
        %400 = vmatpush1.xpose.msra.mxu0 0.0
        %401 = vmatprep.subr.mxu0 0.0
        %402 = vmatpush1.xpose.msra.mxu0 0.0
        %403 = vmatprep.subr.mxu0 0.0
        %404 = vmatpush1.xpose.msra.mxu0 0.0
        %405 = vmatprep.subr.mxu0 0.0
        %406 = vmatpush1.xpose.msra.mxu0 0.0
        %407 = vmatprep.subr.mxu0 0.0
        %408 = vmatpush1.xpose.msra.mxu0 0.0
        %409 = vmatprep.subr.mxu0 0.0
        %410 = vmatpush1.xpose.msra.mxu0 0.0
        %411 = vmatprep.subr.mxu0 0.0
        %412 = vmatpush1.xpose.msra.mxu0 0.0
        %413 = vmatprep.subr.mxu0 0.0
        %414 = vmatpush1.xpose.msra.mxu0 0.0
        %415 = vmatprep.subr.mxu0 0.0
        %416 = vmatpush1.xpose.msra.mxu0 0.0
        %417 = vmatprep.subr.mxu0 0.0
        %418 = vmatpush1.xpose.msra.mxu0 0.0
        %419 = vmatprep.subr.mxu0 0.0
        %420 = vmatpush1.xpose.msra.mxu0 0.0
        %421 = vmatprep.subr.mxu0 0.0
        %422 = vmatpush1.xpose.msra.mxu0 0.0
        %423 = vmatprep.subr.mxu0 0.0
        %424 = vmatpush1.xpose.msra.mxu0 0.0
        %425 = vmatprep.subr.mxu0 0.0
        %426 = vmatpush1.xpose.msra.mxu0 0.0
        %427 = vmatprep.subr.mxu0 0.0
        %428 = vmatpush1.xpose.msra.mxu0 0.0
        %429 = vmatprep.subr.mxu0 0.0
        %430 = vmatpush1.xpose.msra.mxu0 0.0
        %431 = vmatprep.subr.mxu0 0.0
        %432 = vmatpush1.xpose.msra.mxu0 0.0
        %433 = vmatprep.subr.mxu0 0.0
        %434 = vmatpush1.xpose.msra.mxu0 0.0
        %435 = vmatprep.subr.mxu0 0.0
        %436 = vmatpush1.xpose.msra.mxu0 0.0
        %437 = vmatprep.subr.mxu0 0.0
        %438 = vmatpush1.xpose.msra.mxu0 0.0
        %439 = vmatprep.subr.mxu0 0.0
        %440 = vmatpush1.xpose.msra.mxu0 0.0
        %441 = vmatprep.subr.mxu0 0.0
        %442 = vmatpush1.xpose.msra.mxu0 0.0
        %443 = vmatprep.subr.mxu0 0.0
        %444 = vmatpush1.xpose.msra.mxu0 0.0
        %445 = vmatprep.subr.mxu0 0.0
        %446 = vmatpush1.xpose.msra.mxu0 0.0
        %447 = vmatprep.subr.mxu0 0.0
        %448 = vmatpush1.xpose.msra.mxu0 0.0
        %449 = vmatprep.subr.mxu0 0.0
        %450 = vmatpush1.xpose.msra.mxu0 0.0
        %451 = vmatprep.mubr.f32.mxu0 0.0
        %452 = vmatmul.mubr.f32.gmra.mrb[0].mxu0 %v379
        %v453 = vpop.f32.mrb[0].mxu0
        %v454 = vadd.f32 %v377, %v453
        %v455 = vpop.f32.mrb[0].mxu0
        %456 = vdwg.mxu0
        %vm457 = vcmask 130048
        %v458 = vsel %vm457, %v454, -inf
        %v459 = vrot.slane %v458, 4
        %v460 = vmax.f32 %v458, %v459
        %v461 = vrot.slane %v460, 2
        %v462 = vmax.f32 %v460, %v461
        %v463 = vrot.slane %v462, 1
        %v464 = vmax.f32 %v462, %v463
        %v465 = vsub.f32 %v454, %v464
        %v466 = vmul.f32 %v465, 1.442695
        %v467 = vpow.pop %v466
        %v468 = vsel %vm457, %v467, 0.0
        %v469 = vrot.slane %v468, 4
        %v470 = vadd.f32 %v468, %v469
        %v471 = vrot.slane %v470, 2
        %v472 = vadd.f32 %v470, %v471
        %v473 = vrot.slane %v472, 1
        %v474 = vadd.f32 %v472, %v473
        %v475 = vrcp.pop %v474
        %v476 = vmul.f32 %v467, %v475
        %477 = vst.msk [vmem:[%s284] sm:$0xff] %vm457, %v476
        %s478 = sand.u32 %s142, 1
        %s479 = scalar_lea.sflag [#allocation4], %s478
        %s480 = sand.u32 %s142, 1
        %s481 = smul.addr %s480, 8
        %s482 = scalar_lea.vmem [#allocation8], %s481
        // Predicated region
        $region49: #{tpu_custom_call.1} parent=35 // pred_check
          %p483 = pneg %p152
        $region50: #{tpu_custom_call.1} parent=35 // pred_check_branch
          %485 = sbr.rel (%p483) target = $region52
        $region51: #{tpu_custom_call.1} parent=35 // pred_region
          %s487 = ssub.s32 128, 128
          %488 = vsyncadd %s479, %s487
          %s489 = sadd.s32 %s29, %s28
          %s490 = smul.addr %s489, 128
          %s491 = scalar_lea.hbm %s4, %s490
          %s493 = sshll.u32 %s482, 4
          %s494 = int_to_ptr.vmem [resolvable:$true] %s493
          %496 = dma.vmem_to_hbm [thread:$0]  %s494, 128, %s491, %s479
        $region52: #{tpu_custom_call.1} parent=35 // pred_fallthru
          _
      $region36: #{tpu_custom_call.1} parent=5 // pred_fallthru
        _
      %p497 = scmp.le.s32.totalorder 2, %s19
      // Predicated region
      $region53: #{tpu_custom_call.1} parent=5 // pred_check
        %p498 = pneg %p497
      $region54: #{tpu_custom_call.1} parent=5 // pred_check_branch
        %500 = sbr.rel (%p498) target = $region56
      $region55: #{tpu_custom_call.1} parent=5 // pred_region
        %s501 = ssub.s32 %s19, 2
        // Predicated region
        $region57: #{tpu_custom_call.1} parent=55 // pred_check
          %p502 = pneg %p158
        $region58: #{tpu_custom_call.1} parent=55 // pred_check_branch
          %504 = sbr.rel (%p502) target = $region60
        $region59: #{tpu_custom_call.1} parent=55 // pred_region
          %s505 = sand.u32 %s143, 1
          %s506 = scalar_lea.sflag [#allocation4], %s505
          %s507 = sand.u32 %s143, 1
          %s508 = smul.addr %s507, 8
          %s509 = scalar_lea.vmem [#allocation8], %s508
          %510 = dma.done %s506, 128
        $region60: #{tpu_custom_call.1} parent=55 // pred_fallthru
          _
      $region56: #{tpu_custom_call.1} parent=5 // pred_fallthru
        _
    $region6: #{tpu_custom_call.1} parent=1 // loop_footer
      %s23 = sadd.s32 1, %s19
    $region7: #{tpu_custom_call.1} parent=1 // loop_footer_branch
      %18 = sbr.rel target = $region3
    $region8: #{tpu_custom_call.1} parent=1 // loop_exit
      _
    %511 = vsyncpa [#allocation3], 1
    %s512 = scalar_lea.sflag [#allocation3], 1
    %513 = vsyncpa %s512, 1
    %514 = vsyncpa [#allocation6], 1
    %s515 = scalar_lea.sflag [#allocation6], 1
    %516 = vsyncpa %s515, 1
    %517 = vsyncpa [#allocation4], 1
    %s518 = scalar_lea.sflag [#allocation4], 1
    %519 = vsyncpa %s518, 1

</llo_original>
